<compile_context>
chip_gen: v7x
topology: tpu7x:2x2x1
jax: 0.10.0
libtpu: 0.0.40
codegen_flags: <defaults>
</compile_context>

<pallas_src>
import functools

import jax
import jax.numpy as jnp
from jax.experimental import pallas as pl
from jax.experimental.pallas import tpu as pltpu


def _layernorm(h, gamma, beta, eps=1e-5):
    # Single pass over the data: var = E[x^2] - E[x]^2 (saves one full
    # vld/VPU sweep over the (TB, H) activation per LN layer).
    mean = jnp.mean(h, axis=-1, keepdims=True)
    mean2 = jnp.mean(h * h, axis=-1, keepdims=True)
    var = mean2 - mean * mean
    return (h - mean) * jax.lax.rsqrt(var + eps) * gamma + beta


def _critic_kernel(in_dim, layer_norm, matmul_dtype, tanh_dtype, *refs):
    refs = list(refs)
    x_ref = refs.pop(0)          # (TB, in_dim)  f32
    w1_ref = refs.pop(0)         # (in_dim, H)   f32
    b1_ref = refs.pop(0)         # (1, H)        f32
    w2_ref = refs.pop(0)         # (H, H)        matmul_dtype
    b2_ref = refs.pop(0)         # (1, H)        f32
    w3_ref = refs.pop(0)         # (1, H)        f32
    b3_ref = refs.pop(0)         # (C,)          f32 in SMEM
    if layer_norm:
        g1_ref = refs.pop(0)
        be1_ref = refs.pop(0)
        g2_ref = refs.pop(0)
        be2_ref = refs.pop(0)
    out_ref = refs.pop(0)        # (TB, 1)

    x = x_ref[...]
    w1 = w1_ref[...]

    # ---- Layer 1: Linear(in_dim, H). in_dim is tiny (3 or 4); an MXU push
    # would be ~97% padding, so use unrolled VPU rank-1 (broadcast-FMA) updates.
    h = b1_ref[...] + x[:, 0:1] * w1[0:1, :]
    for k in range(1, in_dim):
        h = h + x[:, k:k + 1] * w1[k:k + 1, :]
    if layer_norm:
        h = _layernorm(h, g1_ref[...], be1_ref[...])
    # tanh in tanh_dtype (bf16 on v6e/v7x => 16x128 packed vregs on the EUP);
    # result cast to matmul_dtype so the MXU gets native-rate inputs.
    a1 = jnp.tanh(h.astype(tanh_dtype)).astype(matmul_dtype)

    # ---- Layer 2: Linear(H, H) on the MXU, low-precision inputs, f32 acc.
    h = jnp.dot(a1, w2_ref[...], preferred_element_type=jnp.float32)
    h = h + b2_ref[...]
    if layer_norm:
        h = _layernorm(h, g2_ref[...], be2_ref[...])
    a2 = jnp.tanh(h.astype(tanh_dtype)).astype(jnp.float32)

    # ---- Layer 3: Linear(H, 1) as VPU multiply + lane (XLU) reduction; the
    # scalar bias is a cheap SMEM read instead of a (1,1) VMEM tile.
    b3 = b3_ref[pl.program_id(0)]
    out = jnp.sum(a2 * w3_ref[...], axis=-1, keepdims=True) + b3
    out_ref[...] = out.astype(out_ref.dtype)


def critic_forward(params, state, action=None, *, state_action=False,
                   layer_norm=False, block_b=1024,
                   matmul_dtype=jnp.bfloat16, tanh_dtype=None):
    """Pallas Critic.forward for an ensemble of C critics.

    Every entry of `params` has a leading critic axis C (C=1 == the PyTorch
    module).  Returns (B,) for C == 1, else (C, B).
    Set matmul_dtype=jnp.float32 / tanh_dtype=jnp.float32 for exact-f32 mode.
    """
    if tanh_dtype is None:
        try:
            kind = jax.devices()[0].device_kind.lower()
        except Exception:  # pragma: no cover
            kind = ""
        # v5-generation chips have no bf16 VPU/EUP -> keep tanh in f32 there.
        tanh_dtype = jnp.float32 if "v5" in kind else matmul_dtype

    state = state.astype(jnp.float32)
    C, in_dim, H = params["w1"].shape
    B = state.shape[0]

    if state_action:
        assert action is not None
        action = action.astype(jnp.float32)
        # One fused (B, in_dim) input: single DMA stream; the kernel applies it
        # as per-column rank-1 updates, correct for any action_dim.
        x = jnp.concatenate([state, action], axis=1)
    else:
        x = state
    assert x.shape[1] == in_dim, (x.shape, in_dim)

    # ---- batch tiling + VMEM budget ----------------------------------------
    b8 = ((B + 7) // 8) * 8
    tb = max(8, min((block_b // 8) * 8, b8))

    mdt_bytes = jnp.dtype(matmul_dtype).itemsize

    def vmem_estimate(tb_):
        io = 2 * tb_ * (in_dim + 1) * 4                            # 2x (x + out) tiles
        weights = 2 * (in_dim * H * 4 + H * H * mdt_bytes + 6 * H * 4)
        acts = 4 * tb_ * H * 4                                     # f32 activation temps
        return io + weights + acts

    while tb > 256 and vmem_estimate(tb) > 40 * 2**20:
        tb = max(256, ((tb // 2) + 7) // 8 * 8)
    # Sized from the footprint, clamped so it also fits v7x (64 MiB physical).
    vmem_limit = int(min(48 * 2**20, max(16 * 2**20, 2 * vmem_estimate(tb))))

    padded_b = ((B + tb - 1) // tb) * tb
    if padded_b != B:
        x = jnp.pad(x, ((0, padded_b - B), (0, 0)))
    grid = (C, padded_b // tb)

    def per_critic(*dims):
        # Leading None squeezes the critic axis in-kernel; the index map
        # ignores the batch axis so parameters stay VMEM-resident across it.
        return pl.BlockSpec((None,) + dims,
                            lambda c, i: (c,) + (0,) * len(dims))

    w2 = params["w2"].astype(matmul_dtype)   # halves W2 DMA + resident VMEM

    operands = [x, params["w1"], params["b1"], w2, params["b2"],
                params["w3"], params["b3"].reshape(C)]
    in_specs = [
        pl.BlockSpec((tb, in_dim), lambda c, i: (i, 0)),
        per_critic(in_dim, H), per_critic(1, H),
        per_critic(H, H), per_critic(1, H),
        per_critic(1, H),
        pl.BlockSpec(memory_space=pltpu.MemorySpace.SMEM),
    ]
    if layer_norm:
        operands += [params["g1"], params["be1"], params["g2"], params["be2"]]
        in_specs += [per_critic(1, H)] * 4

    # With C > 1, only the critic axis is eligible for the v7x 2-TC split so
    # each core's W2 is DMA'd once; with C == 1 let the batch axis split.
    dim_sems = ("parallel", "arbitrary" if C > 1 else "parallel")

    out = pl.pallas_call(
        functools.partial(_critic_kernel, in_dim, layer_norm,
                          matmul_dtype, tanh_dtype),
        out_shape=jax.ShapeDtypeStruct((C, padded_b, 1), jnp.float32),
        grid=grid,
        in_specs=in_specs,
        out_specs=pl.BlockSpec((None, tb, 1), lambda c, i: (c, i, 0)),
        compiler_params=pltpu.CompilerParams(
            dimension_semantics=dim_sems,
            vmem_limit_bytes=vmem_limit),
    )(*operands)

    out = out[:, :B, 0]               # torch's .squeeze(dim=1), per critic
    return out[0] if C == 1 else out


def init_critic_params(key, hidden_size, *, num_critics=1, state_action=False,
                       layer_norm=False):
    """PyTorch nn.Linear default init, stacked along a leading critic axis."""
    in_dim = 3 + (1 if state_action else 0)

    def one(k):
        ks = jax.random.split(k, 6)

        def lin(kw, kb, fan_in, fan_out):
            bound = float(fan_in) ** -0.5
            w = jax.random.uniform(kw, (fan_in, fan_out), jnp.float32, -bound, bound)
            b = jax.random.uniform(kb, (1, fan_out), jnp.float32, -bound, bound)
            return w, b

        w1, b1 = lin(ks[0], ks[1], in_dim, hidden_size)
        w2, b2 = lin(ks[2], ks[3], hidden_size, hidden_size)
        w3, b3 = lin(ks[4], ks[5], hidden_size, 1)
        p = {"w1": w1, "b1": b1, "w2": w2, "b2": b2,
             # final-layer weight kept as a (1, H) row for the VPU projection
             "w3": w3.reshape(1, hidden_size), "b3": b3.reshape(1, 1)}
        if layer_norm:
            p.update({"g1": jnp.ones((1, hidden_size), jnp.float32),
                      "be1": jnp.zeros((1, hidden_size), jnp.float32),
                      "g2": jnp.ones((1, hidden_size), jnp.float32),
                      "be2": jnp.zeros((1, hidden_size), jnp.float32)})
        return p

    plist = [one(k) for k in jax.random.split(key, num_critics)]
    return {name: jnp.stack([p[name] for p in plist], axis=0) for name in plist[0]}


def _reference_forward(params, state, action, state_action, layer_norm,
                       matmul_dtype=jnp.float32, tanh_dtype=None):
    """Pure-JAX reference. With matmul_dtype=f32 this is the exact PyTorch
    semantics; with bf16 it mirrors the kernel's deliberate low-precision
    casts so the comparison stays tight."""
    if tanh_dtype is None:
        tanh_dtype = matmul_dtype
    C = params["w1"].shape[0]
    x = jnp.concatenate([state, action], axis=1) if state_action else state
    outs = []
    for c in range(C):
        h = x @ params["w1"][c] + params["b1"][c]
        if layer_norm:
            h = _layernorm(h, params["g1"][c], params["be1"][c])
        a1 = jnp.tanh(h.astype(tanh_dtype)).astype(matmul_dtype)
        h = jnp.dot(a1, params["w2"][c].astype(matmul_dtype),
                    preferred_element_type=jnp.float32) + params["b2"][c]
        if layer_norm:
            h = _layernorm(h, params["g2"][c], params["be2"][c])
        a2 = jnp.tanh(h.astype(tanh_dtype)).astype(jnp.float32)
        out = jnp.sum(a2 * params["w3"][c], axis=-1) + params["b3"][c, 0, 0]
        outs.append(out)
    out = jnp.stack(outs)             # (C, B)
    return out[0] if C == 1 else out


if __name__ == "__main__":
    key = jax.random.PRNGKey(0)
    k_state, k_action, k_p1, k_p2 = jax.random.split(key, 4)

    B = 8
    hidden_size = 32
    state = jax.random.normal(k_state, (B, 3), jnp.float32)
    action = jax.random.normal(k_action, (B, 1), jnp.float32)

    ok = True

    # Case 1: single critic, state-only, no LayerNorm, full-f32 path
    # (bit-compatible with the PyTorch module up to fp rounding).
    params1 = init_critic_params(k_p1, hidden_size, num_critics=1,
                                 state_action=False, layer_norm=False)
    out1 = critic_forward(params1, state, state_action=False, layer_norm=False,
                          matmul_dtype=jnp.float32, tanh_dtype=jnp.float32)
    out1 = jax.block_until_ready(out1)
    ref1 = _reference_forward(params1, state, None, False, False,
                              matmul_dtype=jnp.float32)
    ok &= out1.shape == (B,)
    ok &= bool(jnp.allclose(out1, ref1, atol=1e-4, rtol=1e-4))

    # Case 2: twin-Q (C=2), state+action, LayerNorm, default bf16 MXU/tanh
    # path; compared against a reference that mirrors the bf16 casts.
    params2 = init_critic_params(k_p2, hidden_size, num_critics=2,
                                 state_action=True, layer_norm=True)
    out2 = critic_forward(params2, state, action, state_action=True,
                          layer_norm=True)
    out2 = jax.block_until_ready(out2)
    ref2 = _reference_forward(params2, state, action, True, True,
                              matmul_dtype=jnp.bfloat16)
    ok &= out2.shape == (2, B)
    ok &= bool(jnp.allclose(out2, ref2, atol=3e-2, rtol=3e-2))

    if ok:
        print("KERNEL_OK")
</pallas_src>

<mosaic_0001>
module attributes {stable_mosaic.version = 11 : i64} {
  func.func @_critic_kernel(%arg0: i32, %arg1: i32, %arg2: memref<8x3xf32, #tpu.memory_space<vmem>>, %arg3: memref<1x3x32xf32, #tpu.memory_space<vmem>>, %arg4: memref<1x1x32xf32, #tpu.memory_space<vmem>>, %arg5: memref<1x32x32xf32, #tpu.memory_space<vmem>>, %arg6: memref<1x1x32xf32, #tpu.memory_space<vmem>>, %arg7: memref<1x1x32xf32, #tpu.memory_space<vmem>>, %arg8: memref<1xf32, #tpu.memory_space<smem>>, %arg9: memref<1x8x1xf32, #tpu.memory_space<vmem>>) attributes {dimension_semantics = [#tpu.dimension_semantics<parallel>, #tpu.dimension_semantics<parallel>], iteration_bounds = array<i64: 1, 1>, scalar_prefetch = 0 : i64, scratch_operands = 0 : i64, tpu.core_type = #tpu.core_type<tc>, window_params = [{transform_indices = @transform_0, window_bounds = array<i64: 8, 3>}, {transform_indices = @transform_1, window_bounds = array<i64: 1, 3, 32>}, {transform_indices = @transform_2, window_bounds = array<i64: 1, 1, 32>}, {transform_indices = @transform_3, window_bounds = array<i64: 1, 32, 32>}, {transform_indices = @transform_4, window_bounds = array<i64: 1, 1, 32>}, {transform_indices = @transform_5, window_bounds = array<i64: 1, 1, 32>}, {transform_indices = @transform_6, window_bounds = array<i64: 1>}, {transform_indices = @transform_7, window_bounds = array<i64: 1, 8, 1>}]} {
    %c0 = arith.constant 0 : index
    %c0_0 = arith.constant 0 : index
    %0 = vector.load %arg2[%c0, %c0_0] : memref<8x3xf32, #tpu.memory_space<vmem>>, vector<8x3xf32>
    %c0_1 = arith.constant 0 : index
    %c0_2 = arith.constant 0 : index
    %c0_3 = arith.constant 0 : index
    %1 = vector.load %arg3[%c0_1, %c0_2, %c0_3] : memref<1x3x32xf32, #tpu.memory_space<vmem>>, vector<1x3x32xf32>
    %2 = vector.shape_cast %1 : vector<1x3x32xf32> to vector<3x32xf32>
    %c0_4 = arith.constant 0 : index
    %c0_5 = arith.constant 0 : index
    %c0_6 = arith.constant 0 : index
    %3 = vector.load %arg4[%c0_4, %c0_5, %c0_6] : memref<1x1x32xf32, #tpu.memory_space<vmem>>, vector<1x1x32xf32>
    %4 = vector.shape_cast %3 : vector<1x1x32xf32> to vector<1x32xf32>
    %5 = vector.extract_strided_slice %0 {offsets = [0, 0], sizes = [8, 1], strides = [1, 1]} : vector<8x3xf32> to vector<8x1xf32>
    %6 = vector.extract_strided_slice %2 {offsets = [0, 0], sizes = [1, 32], strides = [1, 1]} : vector<3x32xf32> to vector<1x32xf32>
    %7 = vector.broadcast %5 : vector<8x1xf32> to vector<8x32xf32>
    %8 = vector.broadcast %6 : vector<1x32xf32> to vector<8x32xf32>
    %9 = arith.mulf %7, %8 : vector<8x32xf32>
    %10 = vector.broadcast %4 : vector<1x32xf32> to vector<8x32xf32>
    %11 = arith.addf %10, %9 : vector<8x32xf32>
    %12 = vector.extract_strided_slice %0 {offsets = [0, 1], sizes = [8, 1], strides = [1, 1]} : vector<8x3xf32> to vector<8x1xf32>
    %13 = vector.extract_strided_slice %2 {offsets = [1, 0], sizes = [1, 32], strides = [1, 1]} : vector<3x32xf32> to vector<1x32xf32>
    %14 = vector.broadcast %12 : vector<8x1xf32> to vector<8x32xf32>
    %15 = vector.broadcast %13 : vector<1x32xf32> to vector<8x32xf32>
    %16 = arith.mulf %14, %15 : vector<8x32xf32>
    %17 = arith.addf %11, %16 : vector<8x32xf32>
    %18 = vector.extract_strided_slice %0 {offsets = [0, 2], sizes = [8, 1], strides = [1, 1]} : vector<8x3xf32> to vector<8x1xf32>
    %19 = vector.extract_strided_slice %2 {offsets = [2, 0], sizes = [1, 32], strides = [1, 1]} : vector<3x32xf32> to vector<1x32xf32>
    %20 = vector.broadcast %18 : vector<8x1xf32> to vector<8x32xf32>
    %21 = vector.broadcast %19 : vector<1x32xf32> to vector<8x32xf32>
    %22 = arith.mulf %20, %21 : vector<8x32xf32>
    %23 = arith.addf %17, %22 : vector<8x32xf32>
    %24 = math.tanh %23 : vector<8x32xf32>
    %c0_7 = arith.constant 0 : index
    %c0_8 = arith.constant 0 : index
    %c0_9 = arith.constant 0 : index
    %25 = vector.load %arg5[%c0_7, %c0_8, %c0_9] : memref<1x32x32xf32, #tpu.memory_space<vmem>>, vector<1x32x32xf32>
    %26 = vector.shape_cast %25 : vector<1x32x32xf32> to vector<32x32xf32>
    %cst = arith.constant dense<0.000000e+00> : vector<8x32xf32>
    %27 = tpu.matmul %24, %26, %cst {dimension_numbers = #tpu.dot_dimension_numbers<[1], [0], [0], [1], [0, 0, 1, 1], [], []>} : vector<8x32xf32>, vector<32x32xf32>, vector<8x32xf32> -> vector<8x32xf32>
    %c0_10 = arith.constant 0 : index
    %c0_11 = arith.constant 0 : index
    %c0_12 = arith.constant 0 : index
    %28 = vector.load %arg6[%c0_10, %c0_11, %c0_12] : memref<1x1x32xf32, #tpu.memory_space<vmem>>, vector<1x1x32xf32>
    %29 = vector.shape_cast %28 : vector<1x1x32xf32> to vector<1x32xf32>
    %30 = vector.broadcast %29 : vector<1x32xf32> to vector<8x32xf32>
    %31 = arith.addf %27, %30 : vector<8x32xf32>
    %32 = math.tanh %31 : vector<8x32xf32>
    %33 = arith.index_cast %arg0 : i32 to index
    %34 = memref.load %arg8[%33] : memref<1xf32, #tpu.memory_space<smem>>
    %c0_13 = arith.constant 0 : index
    %c0_14 = arith.constant 0 : index
    %c0_15 = arith.constant 0 : index
    %35 = vector.load %arg7[%c0_13, %c0_14, %c0_15] : memref<1x1x32xf32, #tpu.memory_space<vmem>>, vector<1x1x32xf32>
    %36 = vector.shape_cast %35 : vector<1x1x32xf32> to vector<1x32xf32>
    %37 = vector.broadcast %36 : vector<1x32xf32> to vector<8x32xf32>
    %38 = arith.mulf %32, %37 : vector<8x32xf32>
    %cst_16 = arith.constant dense<0.000000e+00> : vector<8xf32>
    %39 = vector.multi_reduction <add>, %38, %cst_16 [1] : vector<8x32xf32> to vector<8xf32>
    %40 = vector.shape_cast %39 : vector<8xf32> to vector<8x1xf32>
    %41 = vector.broadcast %34 : f32 to vector<8x1xf32>
    %42 = arith.addf %40, %41 : vector<8x1xf32>
    %c0_17 = arith.constant 0 : index
    %c0_18 = arith.constant 0 : index
    %c0_19 = arith.constant 0 : index
    %43 = vector.load %arg9[%c0_17, %c0_18, %c0_19] : memref<1x8x1xf32, #tpu.memory_space<vmem>>, vector<1x8x1xf32>
    %44 = vector.shape_cast %43 : vector<1x8x1xf32> to vector<8x1xf32>
    %45 = vector.shape_cast %42 : vector<8x1xf32> to vector<1x8x1xf32>
    tpu.vector_store %arg9[%c0_17, %c0_18, %c0_19], %45 {strides = array<i32>} : memref<1x8x1xf32, #tpu.memory_space<vmem>>, vector<1x8x1xf32>,
    return
  }
  func.func @transform_0(%arg0: i32, %arg1: i32) -> (i32, i32) {
    %c0_i32 = arith.constant 0 : i32
    %c0_i32_0 = arith.constant 0 : i32
    return %arg1, %c0_i32 : i32, i32
  }
  func.func @transform_1(%arg0: i32, %arg1: i32) -> (i32, i32, i32) {
    %c0_i32 = arith.constant 0 : i32
    %c0_i32_0 = arith.constant 0 : i32
    %c0_i32_1 = arith.constant 0 : i32
    return %arg0, %c0_i32, %c0_i32_0 : i32, i32, i32
  }
  func.func @transform_2(%arg0: i32, %arg1: i32) -> (i32, i32, i32) {
    %c0_i32 = arith.constant 0 : i32
    %c0_i32_0 = arith.constant 0 : i32
    %c0_i32_1 = arith.constant 0 : i32
    return %arg0, %c0_i32, %c0_i32_0 : i32, i32, i32
  }
  func.func @transform_3(%arg0: i32, %arg1: i32) -> (i32, i32, i32) {
    %c0_i32 = arith.constant 0 : i32
    %c0_i32_0 = arith.constant 0 : i32
    %c0_i32_1 = arith.constant 0 : i32
    return %arg0, %c0_i32, %c0_i32_0 : i32, i32, i32
  }
  func.func @transform_4(%arg0: i32, %arg1: i32) -> (i32, i32, i32) {
    %c0_i32 = arith.constant 0 : i32
    %c0_i32_0 = arith.constant 0 : i32
    %c0_i32_1 = arith.constant 0 : i32
    return %arg0, %c0_i32, %c0_i32_0 : i32, i32, i32
  }
  func.func @transform_5(%arg0: i32, %arg1: i32) -> (i32, i32, i32) {
    %c0_i32 = arith.constant 0 : i32
    %c0_i32_0 = arith.constant 0 : i32
    %c0_i32_1 = arith.constant 0 : i32
    return %arg0, %c0_i32, %c0_i32_0 : i32, i32, i32
  }
  func.func @transform_6(%arg0: i32, %arg1: i32) -> i32 {
    %c0_i32 = arith.constant 0 : i32
    %c0_i32_0 = arith.constant 0 : i32
    return %c0_i32 : i32
  }
  func.func @transform_7(%arg0: i32, %arg1: i32) -> (i32, i32, i32) {
    %c0_i32 = arith.constant 0 : i32
    %c0_i32_0 = arith.constant 0 : i32
    return %arg0, %arg1, %c0_i32 : i32, i32, i32
  }
}

</mosaic_0001>

<llo_original>
// kernel: tpu_custom_call.1
$region0: #{tpu_custom_call.1}
  #allocation0 [shape = 'u32[]', space=smem, size = 0x4, offset = 0x4, fixed_abs, tag = 'smem constant byte address 0x4 - core index']
  #allocation1 [shape = 'u32[144,128]{1,0:T(1,128)}', space=vmem, size = 0x12000, scoped, tag = 'internal scratch']
  #allocation2 [shape = 'f32[1]{0:T(128)S(6)}', space=smem, size = 0x200, scoped, tag = 'scoped memory for tpu_custom_call.1']
  %s0 = inlined_call_operand.vmem [shape: f32[8,3], index: 0, kind: input, shape index: {}]
  %s1 = inlined_call_operand.vmem [shape: f32[1,3,32], index: 1, kind: input, shape index: {}]
  %s2 = inlined_call_operand.vmem [shape: f32[1,1,32], index: 2, kind: input, shape index: {}]
  %s3 = inlined_call_operand.vmem [shape: f32[1,32,32], index: 3, kind: input, shape index: {}]
  %s4 = inlined_call_operand.vmem [shape: f32[1,1,32], index: 4, kind: input, shape index: {}]
  %s5 = inlined_call_operand.vmem [shape: f32[1,1,32], index: 5, kind: input, shape index: {}]
  %s6 = inlined_call_operand.<no memory space> [shape: f32[1], index: 6, kind: input, shape index: {}]
  %s7 = inlined_call_operand.vmem [shape: f32[1,8,1], index: 7, kind: output, shape index: {}]
  %s8 = sld [smem:[#allocation0]]
  $region38: #{tpu_custom_call.1} parent=0
    _
  %s10 = ssub.s32 1, %s8
  %s11 = scalar_select 0, %s10, %s8
  %12 = sst [smem:[#allocation2]] %s6
  // Predicated region
  $region2: #{tpu_custom_call.1} parent=0 // pred_check
    _
  $region3: #{tpu_custom_call.1} parent=0 // pred_check_branch
    %14 = sbr.rel (0) target = $region5
  $region4: #{tpu_custom_call.1} parent=0 // pred_region
    _
  $region5: #{tpu_custom_call.1} parent=0 // pred_fallthru
    _
  // Predicated region
  $region6: #{tpu_custom_call.1} parent=0 // pred_check
    _
  $region7: #{tpu_custom_call.1} parent=0 // pred_check_branch
    %16 = sbr.rel (0) target = $region9
  $region8: #{tpu_custom_call.1} parent=0 // pred_region
    _
  $region9: #{tpu_custom_call.1} parent=0 // pred_fallthru
    _
  // Predicated region
  $region10: #{tpu_custom_call.1} parent=0 // pred_check
    _
  $region11: #{tpu_custom_call.1} parent=0 // pred_check_branch
    %18 = sbr.rel (0) target = $region13
  $region12: #{tpu_custom_call.1} parent=0 // pred_region
    _
  $region13: #{tpu_custom_call.1} parent=0 // pred_fallthru
    _
  // Predicated region
  $region14: #{tpu_custom_call.1} parent=0 // pred_check
    _
  $region15: #{tpu_custom_call.1} parent=0 // pred_check_branch
    %20 = sbr.rel (0) target = $region17
  $region16: #{tpu_custom_call.1} parent=0 // pred_region
    _
  $region17: #{tpu_custom_call.1} parent=0 // pred_fallthru
    _
  // Predicated region
  $region18: #{tpu_custom_call.1} parent=0 // pred_check
    _
  $region19: #{tpu_custom_call.1} parent=0 // pred_check_branch
    %22 = sbr.rel (0) target = $region21
  $region20: #{tpu_custom_call.1} parent=0 // pred_region
    _
  $region21: #{tpu_custom_call.1} parent=0 // pred_fallthru
    _
  // Predicated region
  $region22: #{tpu_custom_call.1} parent=0 // pred_check
    _
  $region23: #{tpu_custom_call.1} parent=0 // pred_check_branch
    %24 = sbr.rel (0) target = $region25
  $region24: #{tpu_custom_call.1} parent=0 // pred_region
    _
  $region25: #{tpu_custom_call.1} parent=0 // pred_fallthru
    _
  // Predicated region
  $region26: #{tpu_custom_call.1} parent=0 // pred_check
    _
  $region27: #{tpu_custom_call.1} parent=0 // pred_check_branch
    %26 = sbr.rel (0) target = $region29
  $region28: #{tpu_custom_call.1} parent=0 // pred_region
    _
  $region29: #{tpu_custom_call.1} parent=0 // pred_fallthru
    _
  %v27 = vld [vmem:[%s0] sm:$0xff]
  %v28 = vld [vmem:[%s1] sm:$0x7]
  %v29 = vld [vmem:[%s2] sm:$0x1]
  %31 = vset.pattern.permute.xlu0 0
  %32 = vperm.xlu0 %31, %v27
  %v33 = vpop.permute.xlu0 %32
  %v35 = vlaneseq
  %v36 = vshrl.u32 %v35, 7
  %v37 = vsub.s32 0, %v36
  %v38 = vrot.slane %v28, %v37
  %v39 = vmul.f32 %v33, %v38
  %v41 = vlaneseq
  %v42 = vshrl.u32 %v41, 7
  %v43 = vsub.s32 0, %v42
  %v44 = vrot.slane %v29, %v43
  %v46 = vadd.f32 %v44, %v39
  %47 = vset.pattern.permute.xlu0 1
  %48 = vperm.xlu0 %47, %v27
  %v49 = vpop.permute.xlu0 %48
  %v51 = vlaneseq
  %v52 = vshrl.u32 %v51, 7
  %v53 = vsub.s32 1, %v52
  %v54 = vrot.slane %v28, %v53
  %v55 = vmul.f32 %v49, %v54
  %v56 = vadd.f32 %v46, %v55
  %57 = vset.pattern.permute.xlu0 2
  %58 = vperm.xlu0 %57, %v27
  %v59 = vpop.permute.xlu0 %58
  %v61 = vlaneseq
  %v62 = vshrl.u32 %v61, 7
  %v63 = vsub.s32 2, %v62
  %v64 = vrot.slane %v28, %v63
  %v65 = vmul.f32 %v59, %v64
  %v66 = vadd.f32 %v56, %v65
  %v67 = vtanh.pop %v66
  %v68 = vld [vmem:[%s3] sm:$0xff]
  %v69 = vld [vmem:[%s3 + $0x8] sm:$0xff]
  %v70 = vld [vmem:[%s3 + $0x10] sm:$0xff]
  %v71 = vld [vmem:[%s3 + $0x18] sm:$0xff]
  %v72 = vld [vmem:[%s4] sm:$0x1]
  %v74 = vlaneseq
  %v75 = vshrl.u32 %v74, 7
  %v76 = vsub.s32 0, %v75
  %v77 = vrot.slane %v72, %v76
  %vm79 = vcmask 261120
  %v81 = vsel %vm79, %v67, 0
  %83 = vmatprep.subr.mxu0 0.0
  %84 = vmatpush1.msra.mxu0 %v68
  %85 = vmatprep.subr.mxu0 0.0
  %86 = vmatpush1.msra.mxu0 %v69
  %87 = vmatprep.subr.mxu0 0.0
  %88 = vmatpush1.msra.mxu0 %v70
  %89 = vmatprep.subr.mxu0 0.0
  %90 = vmatpush1.msra.mxu0 %v71
  %91 = vmatprep.subr.mxu0 0.0
  %92 = vmatpush1.msra.mxu0 0.0
  %93 = vmatprep.subr.mxu0 0.0
  %94 = vmatpush1.msra.mxu0 0.0
  %95 = vmatprep.subr.mxu0 0.0
  %96 = vmatpush1.msra.mxu0 0.0
  %97 = vmatprep.subr.mxu0 0.0
  %98 = vmatpush1.msra.mxu0 0.0
  %99 = vmatprep.subr.mxu0 0.0
  %100 = vmatpush1.msra.mxu0 0.0
  %101 = vmatprep.subr.mxu0 0.0
  %102 = vmatpush1.msra.mxu0 0.0
  %103 = vmatprep.subr.mxu0 0.0
  %104 = vmatpush1.msra.mxu0 0.0
  %105 = vmatprep.subr.mxu0 0.0
  %106 = vmatpush1.msra.mxu0 0.0
  %107 = vmatprep.subr.mxu0 0.0
  %108 = vmatpush1.msra.mxu0 0.0
  %109 = vmatprep.subr.mxu0 0.0
  %110 = vmatpush1.msra.mxu0 0.0
  %111 = vmatprep.subr.mxu0 0.0
  %112 = vmatpush1.msra.mxu0 0.0
  %113 = vmatprep.subr.mxu0 0.0
  %114 = vmatpush1.msra.mxu0 0.0
  %115 = vmatprep.subr.mxu0 0.0
  %116 = vmatpush1.msra.mxu0 0.0
  %117 = vmatprep.subr.mxu0 0.0
  %118 = vmatpush1.msra.mxu0 0.0
  %119 = vmatprep.subr.mxu0 0.0
  %120 = vmatpush1.msra.mxu0 0.0
  %121 = vmatprep.subr.mxu0 0.0
  %122 = vmatpush1.msra.mxu0 0.0
  %123 = vmatprep.subr.mxu0 0.0
  %124 = vmatpush1.msra.mxu0 0.0
  %125 = vmatprep.subr.mxu0 0.0
  %126 = vmatpush1.msra.mxu0 0.0
  %127 = vmatprep.subr.mxu0 0.0
  %128 = vmatpush1.msra.mxu0 0.0
  %129 = vmatprep.subr.mxu0 0.0
  %130 = vmatpush1.msra.mxu0 0.0
  %131 = vmatprep.subr.mxu0 0.0
  %132 = vmatpush1.msra.mxu0 0.0
  %133 = vmatprep.subr.mxu0 0.0
  %134 = vmatpush1.msra.mxu0 0.0
  %135 = vmatprep.subr.mxu0 0.0
  %136 = vmatpush1.msra.mxu0 0.0
  %137 = vmatprep.subr.mxu0 0.0
  %138 = vmatpush1.msra.mxu0 0.0
  %139 = vmatprep.subr.mxu0 0.0
  %140 = vmatpush1.msra.mxu0 0.0
  %141 = vmatprep.subr.mxu0 0.0
  %142 = vmatpush1.msra.mxu0 0.0
  %143 = vmatprep.subr.mxu0 0.0
  %144 = vmatpush1.msra.mxu0 0.0
  %145 = vmatprep.subr.mxu0 0.0
  %146 = vmatpush1.msra.mxu0 0.0
  %147 = vmatprep.mubr.f32.mxu0 0.0
  %148 = vmatmul.mubr.f32.gmra.mrb[0].mxu0 %v81
  %v149 = vpop.f32.mrb[0].mxu0
  %v150 = vadd.f32 %v77, %v149
  %v151 = vpop.f32.mrb[0].mxu0
  %152 = vdwg.mxu0
  %v153 = vtanh.pop %v150
  %s154 = sld [smem:[#allocation2]]
  %v155 = vld [vmem:[%s5] sm:$0x1]
  %v157 = vlaneseq
  %v158 = vshrl.u32 %v157, 7
  %v159 = vsub.s32 0, %v158
  %v160 = vrot.slane %v155, %v159
  %v162 = vmul.f32 %v153, %v160
  %v163 = vsel %vm79, %v162, 0.0
  %164 = vadd.xlane.f32.xlu0 %v163
  %v165 = vpop.xlane.xlu0 %164
  %v166 = vstv %s154
  %v167 = vadd.f32 %v165, %v166
  %vm168 = vcmask 7168
  %169 = vst.msk [vmem:[%s7] sm:$0xff] %vm168, %v167
  // Predicated region
  $region30: #{tpu_custom_call.1} parent=0 // pred_check
    _
  $region31: #{tpu_custom_call.1} parent=0 // pred_check_branch
    %171 = sbr.rel (0) target = $region33
  $region32: #{tpu_custom_call.1} parent=0 // pred_region
    _
  $region33: #{tpu_custom_call.1} parent=0 // pred_fallthru
    _
  // Predicated region
  $region34: #{tpu_custom_call.1} parent=0 // pred_check
    _
  $region35: #{tpu_custom_call.1} parent=0 // pred_check_branch
    %173 = sbr.rel (0) target = $region37
  $region36: #{tpu_custom_call.1} parent=0 // pred_region
    _
  $region37: #{tpu_custom_call.1} parent=0 // pred_fallthru
    _

</llo_original>
